<compile_context>
chip_gen: v6e
topology: v6e:2x2x1
jax: 0.10.0
libtpu: 0.0.40
codegen_flags: <defaults>
</compile_context>

<pallas_src>
import functools

import jax
import jax.numpy as jnp
from jax.experimental import pallas as pl
from jax.experimental.pallas import tpu as pltpu


def _mean_conv_kernel(x_ref, w_ref, b_ref, o_ref, acc_ref, *, k_axis, inv_hw):
    # x_ref  : (TC, HW)      C_in chunk of one batch element (streamed, double-buffered)
    # w_ref  : (C_out, C_in) full 1x1-conv weight, VMEM-resident (constant index_map)
    # b_ref  : (C_out, 1)    bias, VMEM-resident
    # o_ref  : (C_out, 1)    output for this batch element (written on last k step)
    # acc_ref: (C_in, 1)     per-channel spatial-sum scratch (f32)
    k = pl.program_id(k_axis)
    tc = x_ref.shape[0]

    # Spatial (H*W) partial sums for this channel chunk. XLU lane-reduce; hides
    # completely under the chunk's HBM->VMEM DMA.
    start = pl.multiple_of(k * tc, tc)
    acc_ref[pl.ds(start, tc), :] = jnp.sum(x_ref[...], axis=-1, keepdims=True)

    @pl.when(k == pl.num_programs(k_axis) - 1)
    def _finalize():
        # Channel contraction (C_out, C_in) @ (C_in, 1) on the MXU, then fold in
        # the 1/HW mean scale and the bias (C_out muls + adds, free).
        y = jnp.dot(w_ref[...], acc_ref[...], preferred_element_type=jnp.float32)
        o_ref[...] = (y * inv_hw + b_ref[...]).astype(o_ref.dtype)


def mean_conv2d_1x1(x, weight, bias, *, tc=240):
    """x: (N, C_in, H, W); weight: (C_out, C_in, 1, 1); bias: (C_out,).

    Equivalent to: x.mean((2, 3), keepdim=True) -> Conv2d(C_in, C_out, 1x1).
    Returns (N, C_out, 1, 1).
    """
    N, C_in, H, W = x.shape
    C_out = weight.shape[0]
    HW = H * W

    tc = min(tc, C_in)
    assert C_in % tc == 0 and tc % 8 == 0, (C_in, tc)
    n_chunks = C_in // tc

    # Pure metadata reshapes -- no materialized transposes or pre-scaling.
    x_flat = x.reshape(N, C_in, HW)
    w2d = weight.reshape(C_out, C_in)
    b2d = bias.reshape(C_out, 1)

    if N == 1:
        grid = (n_chunks,)
        k_axis = 0
        x_map = lambda k: (0, k, 0)
        const2 = lambda k: (0, 0)
        o_map = lambda k: (0, 0, 0)
        dim_sem = ("arbitrary",)
    else:
        grid = (N, n_chunks)
        k_axis = 1
        x_map = lambda n, k: (n, k, 0)
        const2 = lambda n, k: (0, 0)
        o_map = lambda n, k: (n, 0, 0)
        dim_sem = ("parallel", "arbitrary")

    kernel = functools.partial(_mean_conv_kernel, k_axis=k_axis, inv_hw=1.0 / HW)

    flops = 2 * N * C_in * HW + 2 * N * C_out * C_in
    bytes_accessed = (x_flat.size + w2d.size + b2d.size + N * C_out) * x.dtype.itemsize

    out = pl.pallas_call(
        kernel,
        out_shape=jax.ShapeDtypeStruct((N, C_out, 1), jnp.float32),
        grid_spec=pltpu.PrefetchScalarGridSpec(
            num_scalar_prefetch=0,
            grid=grid,
            in_specs=[
                pl.BlockSpec((pl.Squeezed(), tc, HW), x_map),   # streamed x chunks
                pl.BlockSpec((C_out, C_in), const2),            # resident weight
                pl.BlockSpec((C_out, 1), const2),               # resident bias
            ],
            out_specs=pl.BlockSpec((pl.Squeezed(), C_out, 1), o_map),
            scratch_shapes=[pltpu.VMEM((C_in, 1), jnp.float32)],
        ),
        compiler_params=pltpu.CompilerParams(dimension_semantics=dim_sem),
        cost_estimate=pl.CostEstimate(
            flops=flops, transcendentals=0, bytes_accessed=bytes_accessed),
    )(x_flat, w2d, b2d)

    return out.reshape(N, C_out, 1, 1).astype(x.dtype)


def reference(x, weight, bias):
    m = jnp.mean(x, axis=(2, 3), keepdims=True)              # (N, C_in, 1, 1)
    w = weight.reshape(weight.shape[0], weight.shape[1])
    return jnp.einsum("ncij,oc->noij", m, w) + bias.reshape(1, -1, 1, 1)


if __name__ == "__main__":
    key = jax.random.PRNGKey(0)
    k_x, k_w, k_b = jax.random.split(key, 3)

    N, C_in, H, W = 1, 480, 28, 28
    C_out = 20

    x = jax.random.normal(k_x, (N, C_in, H, W), dtype=jnp.float32)
    # Deterministic parameter init (shapes from Conv2d(480, 20, kernel_size=1))
    bound = 1.0 / (C_in ** 0.5)
    weight = jax.random.uniform(k_w, (C_out, C_in, 1, 1),
                                minval=-bound, maxval=bound, dtype=jnp.float32)
    bias = jax.random.uniform(k_b, (C_out,),
                              minval=-bound, maxval=bound, dtype=jnp.float32)

    y = mean_conv2d_1x1(x, weight, bias)
    y = jax.block_until_ready(y)

    y_ref = reference(x, weight, bias)
    assert y.shape == (N, C_out, 1, 1), y.shape
    assert jnp.allclose(y, y_ref, atol=1e-4, rtol=1e-4), "mismatch vs reference"

    print("KERNEL_OK")
</pallas_src>

<mosaic_0001>
module attributes {stable_mosaic.version = 11 : i64} {
  func.func @_mean_conv_kernel(%arg0: i32, %arg1: memref<1x240x784xf32, #tpu.memory_space<vmem>>, %arg2: memref<20x480xf32, #tpu.memory_space<vmem>>, %arg3: memref<20x1xf32, #tpu.memory_space<vmem>>, %arg4: memref<1x20x1xf32, #tpu.memory_space<vmem>>, %arg5: memref<480x1xf32, #tpu.memory_space<vmem>>) attributes {dimension_semantics = [#tpu.dimension_semantics<arbitrary>], iteration_bounds = array<i64: 2>, scalar_prefetch = 0 : i64, scratch_operands = 1 : i64, tpu.core_type = #tpu.core_type<tc>, window_params = [{transform_indices = @transform_0, window_bounds = array<i64: 1, 240, 784>}, {pipeline_mode = #tpu.pipeline_mode<synchronous>, transform_indices = @transform_1, window_bounds = array<i64: 20, 480>}, {pipeline_mode = #tpu.pipeline_mode<synchronous>, transform_indices = @transform_2, window_bounds = array<i64: 20, 1>}, {pipeline_mode = #tpu.pipeline_mode<synchronous>, transform_indices = @transform_3, window_bounds = array<i64: 1, 20, 1>}]} {
    %c240_i32 = arith.constant 240 : i32
    %0 = arith.muli %arg0, %c240_i32 : i32
    %1 = tpu.assume_multiple %0, 240 : i32
    %c0 = arith.constant 0 : index
    %c0_0 = arith.constant 0 : index
    %c0_1 = arith.constant 0 : index
    %2 = vector.load %arg1[%c0, %c0_0, %c0_1] : memref<1x240x784xf32, #tpu.memory_space<vmem>>, vector<1x240x784xf32>
    %3 = vector.shape_cast %2 : vector<1x240x784xf32> to vector<240x784xf32>
    %cst = arith.constant dense<0.000000e+00> : vector<240xf32>
    %4 = vector.multi_reduction <add>, %3, %cst [1] : vector<240x784xf32> to vector<240xf32>
    %5 = vector.shape_cast %4 : vector<240xf32> to vector<240x1xf32>
    %6 = arith.index_cast %1 : i32 to index
    %c0_2 = arith.constant 0 : index
    %7 = vector.load %arg5[%6, %c0_2] : memref<480x1xf32, #tpu.memory_space<vmem>>, vector<240x1xf32>
    tpu.vector_store %arg5[%6, %c0_2], %5 {strides = array<i32>} : memref<480x1xf32, #tpu.memory_space<vmem>>, vector<240x1xf32>,
    %c1_i32 = arith.constant 1 : i32
    %8 = arith.cmpi eq, %arg0, %c1_i32 : i32
    %9 = arith.extui %8 : i1 to i32
    %c0_i32 = arith.constant 0 : i32
    %10 = arith.cmpi ne, %9, %c0_i32 : i32
    scf.if %10 {
      %c0_3 = arith.constant 0 : index
      %c0_4 = arith.constant 0 : index
      %11 = vector.load %arg2[%c0_3, %c0_4] : memref<20x480xf32, #tpu.memory_space<vmem>>, vector<20x480xf32>
      %c0_5 = arith.constant 0 : index
      %c0_6 = arith.constant 0 : index
      %12 = vector.load %arg5[%c0_5, %c0_6] : memref<480x1xf32, #tpu.memory_space<vmem>>, vector<480x1xf32>
      %cst_7 = arith.constant dense<0.000000e+00> : vector<20x1xf32>
      %13 = tpu.matmul %11, %12, %cst_7 {dimension_numbers = #tpu.dot_dimension_numbers<[1], [0], [0], [1], [0, 0, 1, 1], [], []>} : vector<20x480xf32>, vector<480x1xf32>, vector<20x1xf32> -> vector<20x1xf32>
      %cst_8 = arith.constant 0.00127551018 : f32
      %14 = vector.broadcast %cst_8 : f32 to vector<20x1xf32>
      %15 = arith.mulf %13, %14 : vector<20x1xf32>
      %c0_9 = arith.constant 0 : index
      %c0_10 = arith.constant 0 : index
      %16 = vector.load %arg3[%c0_9, %c0_10] : memref<20x1xf32, #tpu.memory_space<vmem>>, vector<20x1xf32>
      %17 = arith.addf %15, %16 : vector<20x1xf32>
      %c0_11 = arith.constant 0 : index
      %c0_12 = arith.constant 0 : index
      %c0_13 = arith.constant 0 : index
      %18 = vector.load %arg4[%c0_11, %c0_12, %c0_13] : memref<1x20x1xf32, #tpu.memory_space<vmem>>, vector<1x20x1xf32>
      %19 = vector.shape_cast %18 : vector<1x20x1xf32> to vector<20x1xf32>
      %20 = vector.shape_cast %17 : vector<20x1xf32> to vector<1x20x1xf32>
      tpu.vector_store %arg4[%c0_11, %c0_12, %c0_13], %20 {strides = array<i32>} : memref<1x20x1xf32, #tpu.memory_space<vmem>>, vector<1x20x1xf32>,
    } else {
    }
    return
  }
  func.func @transform_0(%arg0: i32) -> (i32, i32, i32) {
    %c0_i32 = arith.constant 0 : i32
    %c0_i32_0 = arith.constant 0 : i32
    %c0_i32_1 = arith.constant 0 : i32
    return %c0_i32, %arg0, %c0_i32_0 : i32, i32, i32
  }
  func.func @transform_1(%arg0: i32) -> (i32, i32) {
    %c0_i32 = arith.constant 0 : i32
    %c0_i32_0 = arith.constant 0 : i32
    %c0_i32_1 = arith.constant 0 : i32
    return %c0_i32, %c0_i32_0 : i32, i32
  }
  func.func @transform_2(%arg0: i32) -> (i32, i32) {
    %c0_i32 = arith.constant 0 : i32
    %c0_i32_0 = arith.constant 0 : i32
    %c0_i32_1 = arith.constant 0 : i32
    return %c0_i32, %c0_i32_0 : i32, i32
  }
  func.func @transform_3(%arg0: i32) -> (i32, i32, i32) {
    %c0_i32 = arith.constant 0 : i32
    %c0_i32_0 = arith.constant 0 : i32
    %c0_i32_1 = arith.constant 0 : i32
    %c0_i32_2 = arith.constant 0 : i32
    return %c0_i32, %c0_i32_0, %c0_i32_1 : i32, i32, i32
  }
}

</mosaic_0001>

<llo_original>
// kernel: tpu_custom_call.1
$region0: #{tpu_custom_call.1}
  #allocation0 [shape = 'u32[]', space=smem, size = 0x4, offset = 0x4, fixed_abs, tag = 'smem constant byte address 0x4 - core index']
  #allocation1 [shape = 'u32[144,128]{1,0:T(1,128)}', space=vmem, size = 0x12000, scoped, tag = 'internal scratch']
  #allocation2 [shape = 'f32[480,1]{1,0:T(8,128)}', space=vmem, size = 0x3c000, scoped, tag = 'scratch operand']
  %s0 = inlined_call_operand.vmem [shape: f32[1,480,784], index: 0, kind: input, shape index: {}]
  %s1 = inlined_call_operand.vmem [shape: f32[20,480], index: 1, kind: input, shape index: {}]
  %s2 = inlined_call_operand.vmem [shape: f32[20,1], index: 2, kind: input, shape index: {}]
  %s3 = inlined_call_operand.vmem [shape: f32[1,20,1], index: 3, kind: output, shape index: {}]
  %s4 = sld [smem:[#allocation0]]
  $region49: #{tpu_custom_call.1} parent=0
    _
  %s6 = ssub.s32 1, %s4
  %s7 = scalar_select 0, %s6, %s4
  loop: start=0, step=1, limit=4
  $region2: #{tpu_custom_call.1} parent=0 // loop_pre_header
    _
  $region3: #{tpu_custom_call.1} parent=0 // loop_header
    %s9 = sphi 0, %s13
    %p10 = scmp.ge.s32.totalorder %s9, 4
    %s19 = sphi 0, %s21
    %s22 = sphi 0, %s19
    %s23 = sphi 0, %s22
    %s39 = sphi 0, %s23
    %s43 = sphi 0, %s43
    %s45 = sphi 0, %s43
    %s46 = sphi 0, %s45
    %s60 = sphi 0, %s46
    %s64 = sphi 0, %s64
    %s66 = sphi 0, %s64
    %s67 = sphi 0, %s66
    %s81 = sphi 0, %s67
    %s85 = sphi 0, %s85
    %s87 = sphi 0, %s85
    %s88 = sphi 0, %s87
    %s102 = sphi 0, %s88
  $region4: #{tpu_custom_call.1} parent=0 // loop_header_branch
    %12 = sbr.rel (%p10) target = $region8
  $region5: #{tpu_custom_call.1} parent=0 // loop_body
    %s14 = ssub.s32 %s9, 1
    %s15 = ssub.s32 %s9, 2
    %s16 = sadd.s32 %s9, 1
    %s17 = ssub.s32 %s9, %s16
    %p18 = scmp.eq.s32.totalorder %s17, 0
    %s20 = sadd.s32 %s19, 1
    %s21 = scalar_select %p18, %s19, %s20
    %p24 = pneg %p18
    %p25 = scmp.eq.s32.totalorder %s9, 1
    %p26 = por %p24, %p25
    %p27 = scmp.ne.s32.totalorder %s19, %s22
    %p28 = scmp.eq.s32.totalorder %s9, 0
    %p29 = por %p27, %p28
    %p30 = scmp.ne.s32.totalorder %s19, %s22
    %p31 = scmp.eq.s32.totalorder %s14, 1
    %p32 = por %p30, %p31
    %p33 = scmp.ne.s32.totalorder %s22, %s23
    %p34 = scmp.eq.s32.totalorder %s14, 0
    %p35 = por %p33, %p34
    %p36 = scmp.ne.s32.totalorder %s22, %s23
    %p37 = scmp.eq.s32.totalorder %s15, 1
    %p38 = por %p36, %p37
    %p40 = scmp.ne.s32.totalorder %s23, %s39
    %p41 = scmp.eq.s32.totalorder %s15, 0
    %p42 = por %p40, %p41
    %s44 = sadd.s32 %s43, 1
    %p47 = scmp.eq.s32.totalorder %s9, 1
    %p48 = scmp.ne.s32.totalorder %s43, %s45
    %p49 = scmp.eq.s32.totalorder %s9, 0
    %p50 = por %p48, %p49
    %p51 = scmp.ne.s32.totalorder %s43, %s45
    %p52 = scmp.eq.s32.totalorder %s14, 1
    %p53 = por %p51, %p52
    %p54 = scmp.ne.s32.totalorder %s45, %s46
    %p55 = scmp.eq.s32.totalorder %s14, 0
    %p56 = por %p54, %p55
    %p57 = scmp.ne.s32.totalorder %s45, %s46
    %p58 = scmp.eq.s32.totalorder %s15, 1
    %p59 = por %p57, %p58
    %p61 = scmp.ne.s32.totalorder %s46, %s60
    %p62 = scmp.eq.s32.totalorder %s15, 0
    %p63 = por %p61, %p62
    %s65 = sadd.s32 %s64, 1
    %p68 = scmp.eq.s32.totalorder %s9, 1
    %p69 = scmp.ne.s32.totalorder %s64, %s66
    %p70 = scmp.eq.s32.totalorder %s9, 0
    %p71 = por %p69, %p70
    %p72 = scmp.ne.s32.totalorder %s64, %s66
    %p73 = scmp.eq.s32.totalorder %s14, 1
    %p74 = por %p72, %p73
    %p75 = scmp.ne.s32.totalorder %s66, %s67
    %p76 = scmp.eq.s32.totalorder %s14, 0
    %p77 = por %p75, %p76
    %p78 = scmp.ne.s32.totalorder %s66, %s67
    %p79 = scmp.eq.s32.totalorder %s15, 1
    %p80 = por %p78, %p79
    %p82 = scmp.ne.s32.totalorder %s67, %s81
    %p83 = scmp.eq.s32.totalorder %s15, 0
    %p84 = por %p82, %p83
    %s86 = sadd.s32 %s85, 1
    %p89 = scmp.eq.s32.totalorder %s9, 1
    %p90 = scmp.ne.s32.totalorder %s85, %s87
    %p91 = scmp.eq.s32.totalorder %s9, 0
    %p92 = por %p90, %p91
    %p93 = scmp.ne.s32.totalorder %s85, %s87
    %p94 = scmp.eq.s32.totalorder %s14, 1
    %p95 = por %p93, %p94
    %p96 = scmp.ne.s32.totalorder %s87, %s88
    %p97 = scmp.eq.s32.totalorder %s14, 0
    %p98 = por %p96, %p97
    %p99 = scmp.ne.s32.totalorder %s87, %s88
    %p100 = scmp.eq.s32.totalorder %s15, 1
    %p101 = por %p99, %p100
    %p103 = scmp.ne.s32.totalorder %s88, %s102
    %p104 = scmp.eq.s32.totalorder %s15, 0
    %p105 = por %p103, %p104
    %p106 = scmp.le.s32.totalorder 1, %s9
    %p107 = scmp.lt.s32.totalorder %s9, 3
    %p108 = pnand %p106, %p107
    %p109 = pneg %p108
    // Predicated region
    $region9: #{tpu_custom_call.1} parent=5 // pred_check
      _
    $region10: #{tpu_custom_call.1} parent=5 // pred_check_branch
      %111 = sbr.rel (%p108) target = $region12
    $region11: #{tpu_custom_call.1} parent=5 // pred_region
      %s112 = ssub.s32 %s9, 1
      // Predicated region
      $region13: #{tpu_custom_call.1} parent=11 // pred_check
        %p113 = pneg %p56
      $region14: #{tpu_custom_call.1} parent=11 // pred_check_branch
        %115 = sbr.rel (%p113) target = $region16
      $region15: #{tpu_custom_call.1} parent=11 // pred_region
        _
      $region16: #{tpu_custom_call.1} parent=11 // pred_fallthru
        _
      // Predicated region
      $region17: #{tpu_custom_call.1} parent=11 // pred_check
        %p116 = pneg %p77
      $region18: #{tpu_custom_call.1} parent=11 // pred_check_branch
        %118 = sbr.rel (%p116) target = $region20
      $region19: #{tpu_custom_call.1} parent=11 // pred_region
        _
      $region20: #{tpu_custom_call.1} parent=11 // pred_fallthru
        _
    $region12: #{tpu_custom_call.1} parent=5 // pred_fallthru
      _
    %p119 = scmp.lt.s32.totalorder %s9, 2
    // Predicated region
    $region21: #{tpu_custom_call.1} parent=5 // pred_check
      %p120 = pneg %p119
    $region22: #{tpu_custom_call.1} parent=5 // pred_check_branch
      %122 = sbr.rel (%p120) target = $region24
    $region23: #{tpu_custom_call.1} parent=5 // pred_region
      // Predicated region
      $region25: #{tpu_custom_call.1} parent=23 // pred_check
        %p123 = pneg %p29
      $region26: #{tpu_custom_call.1} parent=23 // pred_check_branch
        %125 = sbr.rel (%p123) target = $region28
      $region27: #{tpu_custom_call.1} parent=23 // pred_region
        %s126 = smul.u32 30, %s9
        %p127 = scmp.lt.s32.totalorder %s126, 59
        %s128 = scalar_select %p127, %s126, 59
        %s129 = smul.addr %s128, 7
        %s130 = smul.addr %s129, 8
        %s131 = scalar_lea.vmem %s0, %s130
        %s132 = smul.u32 30, %s9
      $region28: #{tpu_custom_call.1} parent=23 // pred_fallthru
        _
    $region24: #{tpu_custom_call.1} parent=5 // pred_fallthru
      _
    %p133 = scmp.le.s32.totalorder 1, %s9
    %p134 = scmp.lt.s32.totalorder %s9, 3
    %p135 = pnand %p133, %p134
    %p136 = pneg %p135
    // Predicated region
    $region29: #{tpu_custom_call.1} parent=5 // pred_check
      _
    $region30: #{tpu_custom_call.1} parent=5 // pred_check_branch
      %138 = sbr.rel (%p135) target = $region32
    $region31: #{tpu_custom_call.1} parent=5 // pred_region
      %s139 = ssub.s32 %s9, 1
      %s140 = smul.u32 30, %s14
      %p141 = scmp.lt.s32.totalorder %s140, 59
      %s142 = scalar_select %p141, %s140, 59
      %s143 = smul.addr %s142, 7
      %s144 = smul.addr %s143, 8
      %s145 = scalar_lea.vmem %s0, %s144
      %p146 = pneg %p35
      %p147 = pneg %p32
      %p148 = pneg %p56
      %p149 = pneg %p53
      %p150 = pneg %p77
      %p151 = pneg %p74
      %p152 = pneg %p98
      %p153 = pneg %p95
      %s154 = smul.u32 30, %s14
      %p155 = scmp.lt.s32.totalorder %s154, 59
      %s156 = scalar_select %p155, %s154, 59
      %s157 = smul.addr %s156, 7
      %s158 = smul.addr %s157, 8
      %s159 = scalar_lea.vmem %s0, %s158
      %s160 = smul.u32 30, %s14
      %s161 = smul.u32 %s14, 240
      %v162 = vld [vmem:[%s159] sm:$0xff]
      %v163 = vld [vmem:[%s159 + $0x8] sm:$0xff]
      %v164 = vld [vmem:[%s159 + $0x10] sm:$0xff]
      %v165 = vld [vmem:[%s159 + $0x18] sm:$0xff]
      %v166 = vld [vmem:[%s159 + $0x20] sm:$0xff]
      %v167 = vld [vmem:[%s159 + $0x28] sm:$0xff]
      %v168 = vld [vmem:[%s159 + $0x30] sm:$0xff]
      %v169 = vld [vmem:[%s159 + $0x38] sm:$0xff]
      %v170 = vld [vmem:[%s159 + $0x40] sm:$0xff]
      %v171 = vld [vmem:[%s159 + $0x48] sm:$0xff]
      %v172 = vld [vmem:[%s159 + $0x50] sm:$0xff]
      %v173 = vld [vmem:[%s159 + $0x58] sm:$0xff]
      %v174 = vld [vmem:[%s159 + $0x60] sm:$0xff]
      %v175 = vld [vmem:[%s159 + $0x68] sm:$0xff]
      %v176 = vld [vmem:[%s159 + $0x70] sm:$0xff]
      %v177 = vld [vmem:[%s159 + $0x78] sm:$0xff]
      %v178 = vld [vmem:[%s159 + $0x80] sm:$0xff]
      %v179 = vld [vmem:[%s159 + $0x88] sm:$0xff]
      %v180 = vld [vmem:[%s159 + $0x90] sm:$0xff]
      %v181 = vld [vmem:[%s159 + $0x98] sm:$0xff]
      %v182 = vld [vmem:[%s159 + $0xa0] sm:$0xff]
      %v183 = vld [vmem:[%s159 + $0xa8] sm:$0xff]
      %v184 = vld [vmem:[%s159 + $0xb0] sm:$0xff]
      %v185 = vld [vmem:[%s159 + $0xb8] sm:$0xff]
      %v186 = vld [vmem:[%s159 + $0xc0] sm:$0xff]
      %v187 = vld [vmem:[%s159 + $0xc8] sm:$0xff]
      %v188 = vld [vmem:[%s159 + $0xd0] sm:$0xff]
      %v189 = vld [vmem:[%s159 + $0xd8] sm:$0xff]
      %v190 = vld [vmem:[%s159 + $0xe0] sm:$0xff]
      %v191 = vld [vmem:[%s159 + $0xe8] sm:$0xff]
      %v192 = vld [vmem:[%s159 + $0xf0] sm:$0xff]
      %v193 = vld [vmem:[%s159 + $0xf8] sm:$0xff]
      %v194 = vld [vmem:[%s159 + $0x100] sm:$0xff]
      %v195 = vld [vmem:[%s159 + $0x108] sm:$0xff]
      %v196 = vld [vmem:[%s159 + $0x110] sm:$0xff]
      %v197 = vld [vmem:[%s159 + $0x118] sm:$0xff]
      %v198 = vld [vmem:[%s159 + $0x120] sm:$0xff]
      %v199 = vld [vmem:[%s159 + $0x128] sm:$0xff]
      %v200 = vld [vmem:[%s159 + $0x130] sm:$0xff]
      %v201 = vld [vmem:[%s159 + $0x138] sm:$0xff]
      %v202 = vld [vmem:[%s159 + $0x140] sm:$0xff]
      %v203 = vld [vmem:[%s159 + $0x148] sm:$0xff]
      %v204 = vld [vmem:[%s159 + $0x150] sm:$0xff]
      %v205 = vld [vmem:[%s159 + $0x158] sm:$0xff]
      %v206 = vld [vmem:[%s159 + $0x160] sm:$0xff]
      %v207 = vld [vmem:[%s159 + $0x168] sm:$0xff]
      %v208 = vld [vmem:[%s159 + $0x170] sm:$0xff]
      %v209 = vld [vmem:[%s159 + $0x178] sm:$0xff]
      %v210 = vld [vmem:[%s159 + $0x180] sm:$0xff]
      %v211 = vld [vmem:[%s159 + $0x188] sm:$0xff]
      %v212 = vld [vmem:[%s159 + $0x190] sm:$0xff]
      %v213 = vld [vmem:[%s159 + $0x198] sm:$0xff]
      %v214 = vld [vmem:[%s159 + $0x1a0] sm:$0xff]
      %v215 = vld [vmem:[%s159 + $0x1a8] sm:$0xff]
      %v216 = vld [vmem:[%s159 + $0x1b0] sm:$0xff]
      %v217 = vld [vmem:[%s159 + $0x1b8] sm:$0xff]
      %v218 = vld [vmem:[%s159 + $0x1c0] sm:$0xff]
      %v219 = vld [vmem:[%s159 + $0x1c8] sm:$0xff]
      %v220 = vld [vmem:[%s159 + $0x1d0] sm:$0xff]
      %v221 = vld [vmem:[%s159 + $0x1d8] sm:$0xff]
      %v222 = vld [vmem:[%s159 + $0x1e0] sm:$0xff]
      %v223 = vld [vmem:[%s159 + $0x1e8] sm:$0xff]
      %v224 = vld [vmem:[%s159 + $0x1f0] sm:$0xff]
      %v225 = vld [vmem:[%s159 + $0x1f8] sm:$0xff]
      %v226 = vld [vmem:[%s159 + $0x200] sm:$0xff]
      %v227 = vld [vmem:[%s159 + $0x208] sm:$0xff]
      %v228 = vld [vmem:[%s159 + $0x210] sm:$0xff]
      %v229 = vld [vmem:[%s159 + $0x218] sm:$0xff]
      %v230 = vld [vmem:[%s159 + $0x220] sm:$0xff]
      %v231 = vld [vmem:[%s159 + $0x228] sm:$0xff]
      %v232 = vld [vmem:[%s159 + $0x230] sm:$0xff]
      %v233 = vld [vmem:[%s159 + $0x238] sm:$0xff]
      %v234 = vld [vmem:[%s159 + $0x240] sm:$0xff]
      %v235 = vld [vmem:[%s159 + $0x248] sm:$0xff]
      %v236 = vld [vmem:[%s159 + $0x250] sm:$0xff]
      %v237 = vld [vmem:[%s159 + $0x258] sm:$0xff]
      %v238 = vld [vmem:[%s159 + $0x260] sm:$0xff]
      %v239 = vld [vmem:[%s159 + $0x268] sm:$0xff]
      %v240 = vld [vmem:[%s159 + $0x270] sm:$0xff]
      %v241 = vld [vmem:[%s159 + $0x278] sm:$0xff]
      %v242 = vld [vmem:[%s159 + $0x280] sm:$0xff]
      %v243 = vld [vmem:[%s159 + $0x288] sm:$0xff]
      %v244 = vld [vmem:[%s159 + $0x290] sm:$0xff]
      %v245 = vld [vmem:[%s159 + $0x298] sm:$0xff]
      %v246 = vld [vmem:[%s159 + $0x2a0] sm:$0xff]
      %v247 = vld [vmem:[%s159 + $0x2a8] sm:$0xff]
      %v248 = vld [vmem:[%s159 + $0x2b0] sm:$0xff]
      %v249 = vld [vmem:[%s159 + $0x2b8] sm:$0xff]
      %v250 = vld [vmem:[%s159 + $0x2c0] sm:$0xff]
      %v251 = vld [vmem:[%s159 + $0x2c8] sm:$0xff]
      %v252 = vld [vmem:[%s159 + $0x2d0] sm:$0xff]
      %v253 = vld [vmem:[%s159 + $0x2d8] sm:$0xff]
      %v254 = vld [vmem:[%s159 + $0x2e0] sm:$0xff]
      %v255 = vld [vmem:[%s159 + $0x2e8] sm:$0xff]
      %v256 = vld [vmem:[%s159 + $0x2f0] sm:$0xff]
      %v257 = vld [vmem:[%s159 + $0x2f8] sm:$0xff]
      %v258 = vld [vmem:[%s159 + $0x300] sm:$0xff]
      %v259 = vld [vmem:[%s159 + $0x308] sm:$0xff]
      %v260 = vld [vmem:[%s159 + $0x310] sm:$0xff]
      %v261 = vld [vmem:[%s159 + $0x318] sm:$0xff]
      %v262 = vld [vmem:[%s159 + $0x320] sm:$0xff]
      %v263 = vld [vmem:[%s159 + $0x328] sm:$0xff]
      %v264 = vld [vmem:[%s159 + $0x330] sm:$0xff]
      %v265 = vld [vmem:[%s159 + $0x338] sm:$0xff]
      %v266 = vld [vmem:[%s159 + $0x340] sm:$0xff]
      %v267 = vld [vmem:[%s159 + $0x348] sm:$0xff]
      %v268 = vld [vmem:[%s159 + $0x350] sm:$0xff]
      %v269 = vld [vmem:[%s159 + $0x358] sm:$0xff]
      %v270 = vld [vmem:[%s159 + $0x360] sm:$0xff]
      %v271 = vld [vmem:[%s159 + $0x368] sm:$0xff]
      %v272 = vld [vmem:[%s159 + $0x370] sm:$0xff]
      %v273 = vld [vmem:[%s159 + $0x378] sm:$0xff]
      %v274 = vld [vmem:[%s159 + $0x380] sm:$0xff]
      %v275 = vld [vmem:[%s159 + $0x388] sm:$0xff]
      %v276 = vld [vmem:[%s159 + $0x390] sm:$0xff]
      %v277 = vld [vmem:[%s159 + $0x398] sm:$0xff]
      %v278 = vld [vmem:[%s159 + $0x3a0] sm:$0xff]
      %v279 = vld [vmem:[%s159 + $0x3a8] sm:$0xff]
      %v280 = vld [vmem:[%s159 + $0x3b0] sm:$0xff]
      %v281 = vld [vmem:[%s159 + $0x3b8] sm:$0xff]
      %v282 = vld [vmem:[%s159 + $0x3c0] sm:$0xff]
      %v283 = vld [vmem:[%s159 + $0x3c8] sm:$0xff]
      %v284 = vld [vmem:[%s159 + $0x3d0] sm:$0xff]
      %v285 = vld [vmem:[%s159 + $0x3d8] sm:$0xff]
      %v286 = vld [vmem:[%s159 + $0x3e0] sm:$0xff]
      %v287 = vld [vmem:[%s159 + $0x3e8] sm:$0xff]
      %v288 = vld [vmem:[%s159 + $0x3f0] sm:$0xff]
      %v289 = vld [vmem:[%s159 + $0x3f8] sm:$0xff]
      %v290 = vld [vmem:[%s159 + $0x400] sm:$0xff]
      %v291 = vld [vmem:[%s159 + $0x408] sm:$0xff]
      %v292 = vld [vmem:[%s159 + $0x410] sm:$0xff]
      %v293 = vld [vmem:[%s159 + $0x418] sm:$0xff]
      %v294 = vld [vmem:[%s159 + $0x420] sm:$0xff]
      %v295 = vld [vmem:[%s159 + $0x428] sm:$0xff]
      %v296 = vld [vmem:[%s159 + $0x430] sm:$0xff]
      %v297 = vld [vmem:[%s159 + $0x438] sm:$0xff]
      %v298 = vld [vmem:[%s159 + $0x440] sm:$0xff]
      %v299 = vld [vmem:[%s159 + $0x448] sm:$0xff]
      %v300 = vld [vmem:[%s159 + $0x450] sm:$0xff]
      %v301 = vld [vmem:[%s159 + $0x458] sm:$0xff]
      %v302 = vld [vmem:[%s159 + $0x460] sm:$0xff]
      %v303 = vld [vmem:[%s159 + $0x468] sm:$0xff]
      %v304 = vld [vmem:[%s159 + $0x470] sm:$0xff]
      %v305 = vld [vmem:[%s159 + $0x478] sm:$0xff]
      %v306 = vld [vmem:[%s159 + $0x480] sm:$0xff]
      %v307 = vld [vmem:[%s159 + $0x488] sm:$0xff]
      %v308 = vld [vmem:[%s159 + $0x490] sm:$0xff]
      %v309 = vld [vmem:[%s159 + $0x498] sm:$0xff]
      %v310 = vld [vmem:[%s159 + $0x4a0] sm:$0xff]
      %v311 = vld [vmem:[%s159 + $0x4a8] sm:$0xff]
      %v312 = vld [vmem:[%s159 + $0x4b0] sm:$0xff]
      %v313 = vld [vmem:[%s159 + $0x4b8] sm:$0xff]
      %v314 = vld [vmem:[%s159 + $0x4c0] sm:$0xff]
      %v315 = vld [vmem:[%s159 + $0x4c8] sm:$0xff]
      %v316 = vld [vmem:[%s159 + $0x4d0] sm:$0xff]
      %v317 = vld [vmem:[%s159 + $0x4d8] sm:$0xff]
      %v318 = vld [vmem:[%s159 + $0x4e0] sm:$0xff]
      %v319 = vld [vmem:[%s159 + $0x4e8] sm:$0xff]
      %v320 = vld [vmem:[%s159 + $0x4f0] sm:$0xff]
      %v321 = vld [vmem:[%s159 + $0x4f8] sm:$0xff]
      %v322 = vld [vmem:[%s159 + $0x500] sm:$0xff]
      %v323 = vld [vmem:[%s159 + $0x508] sm:$0xff]
      %v324 = vld [vmem:[%s159 + $0x510] sm:$0xff]
      %v325 = vld [vmem:[%s159 + $0x518] sm:$0xff]
      %v326 = vld [vmem:[%s159 + $0x520] sm:$0xff]
      %v327 = vld [vmem:[%s159 + $0x528] sm:$0xff]
      %v328 = vld [vmem:[%s159 + $0x530] sm:$0xff]
      %v329 = vld [vmem:[%s159 + $0x538] sm:$0xff]
      %v330 = vld [vmem:[%s159 + $0x540] sm:$0xff]
      %v331 = vld [vmem:[%s159 + $0x548] sm:$0xff]
      %v332 = vld [vmem:[%s159 + $0x550] sm:$0xff]
      %v333 = vld [vmem:[%s159 + $0x558] sm:$0xff]
      %v334 = vld [vmem:[%s159 + $0x560] sm:$0xff]
      %v335 = vld [vmem:[%s159 + $0x568] sm:$0xff]
      %v336 = vld [vmem:[%s159 + $0x570] sm:$0xff]
      %v337 = vld [vmem:[%s159 + $0x578] sm:$0xff]
      %v338 = vld [vmem:[%s159 + $0x580] sm:$0xff]
      %v339 = vld [vmem:[%s159 + $0x588] sm:$0xff]
      %v340 = vld [vmem:[%s159 + $0x590] sm:$0xff]
      %v341 = vld [vmem:[%s159 + $0x598] sm:$0xff]
      %v342 = vld [vmem:[%s159 + $0x5a0] sm:$0xff]
      %v343 = vld [vmem:[%s159 + $0x5a8] sm:$0xff]
      %v344 = vld [vmem:[%s159 + $0x5b0] sm:$0xff]
      %v345 = vld [vmem:[%s159 + $0x5b8] sm:$0xff]
      %v346 = vld [vmem:[%s159 + $0x5c0] sm:$0xff]
      %v347 = vld [vmem:[%s159 + $0x5c8] sm:$0xff]
      %v348 = vld [vmem:[%s159 + $0x5d0] sm:$0xff]
      %v349 = vld [vmem:[%s159 + $0x5d8] sm:$0xff]
      %v350 = vld [vmem:[%s159 + $0x5e0] sm:$0xff]
      %v351 = vld [vmem:[%s159 + $0x5e8] sm:$0xff]
      %v352 = vld [vmem:[%s159 + $0x5f0] sm:$0xff]
      %v353 = vld [vmem:[%s159 + $0x5f8] sm:$0xff]
      %v354 = vld [vmem:[%s159 + $0x600] sm:$0xff]
      %v355 = vld [vmem:[%s159 + $0x608] sm:$0xff]
      %v356 = vld [vmem:[%s159 + $0x610] sm:$0xff]
      %v357 = vld [vmem:[%s159 + $0x618] sm:$0xff]
      %v358 = vld [vmem:[%s159 + $0x620] sm:$0xff]
      %v359 = vld [vmem:[%s159 + $0x628] sm:$0xff]
      %v360 = vld [vmem:[%s159 + $0x630] sm:$0xff]
      %v361 = vld [vmem:[%s159 + $0x638] sm:$0xff]
      %v362 = vld [vmem:[%s159 + $0x640] sm:$0xff]
      %v363 = vld [vmem:[%s159 + $0x648] sm:$0xff]
      %v364 = vld [vmem:[%s159 + $0x650] sm:$0xff]
      %v365 = vld [vmem:[%s159 + $0x658] sm:$0xff]
      %v366 = vld [vmem:[%s159 + $0x660] sm:$0xff]
      %v367 = vld [vmem:[%s159 + $0x668] sm:$0xff]
      %v368 = vld [vmem:[%s159 + $0x670] sm:$0xff]
      %v369 = vld [vmem:[%s159 + $0x678] sm:$0xff]
      %v370 = vld [vmem:[%s159 + $0x680] sm:$0xff]
      %v371 = vld [vmem:[%s159 + $0x688] sm:$0xff]
      %v372 = vadd.f32 %v162, %v163
      %v373 = vadd.f32 %v372, %v164
      %v374 = vadd.f32 %v373, %v165
      %v375 = vadd.f32 %v374, %v166
      %v376 = vadd.f32 %v375, %v167
      %vm377 = vcmask 130048
      %v378 = vsel %vm377, %v168, 0.0
      %v379 = vadd.f32 %v376, %v378
      %380 = vadd.xlane.f32.xlu0 %v379
      %v381 = vpop.xlane.xlu0 %380
      %v382 = vadd.f32 %v169, %v170
      %v383 = vadd.f32 %v382, %v171
      %v384 = vadd.f32 %v383, %v172
      %v385 = vadd.f32 %v384, %v173
      %v386 = vadd.f32 %v385, %v174
      %v387 = vsel %vm377, %v175, 0.0
      %v388 = vadd.f32 %v386, %v387
      %389 = vadd.xlane.f32.xlu0 %v388
      %v390 = vpop.xlane.xlu0 %389
      %v391 = vadd.f32 %v176, %v177
      %v392 = vadd.f32 %v391, %v178
      %v393 = vadd.f32 %v392, %v179
      %v394 = vadd.f32 %v393, %v180
      %v395 = vadd.f32 %v394, %v181
      %v396 = vsel %vm377, %v182, 0.0
      %v397 = vadd.f32 %v395, %v396
      %398 = vadd.xlane.f32.xlu0 %v397
      %v399 = vpop.xlane.xlu0 %398
      %v400 = vadd.f32 %v183, %v184
      %v401 = vadd.f32 %v400, %v185
      %v402 = vadd.f32 %v401, %v186
      %v403 = vadd.f32 %v402, %v187
      %v404 = vadd.f32 %v403, %v188
      %v405 = vsel %vm377, %v189, 0.0
      %v406 = vadd.f32 %v404, %v405
      %407 = vadd.xlane.f32.xlu0 %v406
      %v408 = vpop.xlane.xlu0 %407
      %v409 = vadd.f32 %v190, %v191
      %v410 = vadd.f32 %v409, %v192
      %v411 = vadd.f32 %v410, %v193
      %v412 = vadd.f32 %v411, %v194
      %v413 = vadd.f32 %v412, %v195
      %v414 = vsel %vm377, %v196, 0.0
      %v415 = vadd.f32 %v413, %v414
      %416 = vadd.xlane.f32.xlu0 %v415
      %v417 = vpop.xlane.xlu0 %416
      %v418 = vadd.f32 %v197, %v198
      %v419 = vadd.f32 %v418, %v199
      %v420 = vadd.f32 %v419, %v200
      %v421 = vadd.f32 %v420, %v201
      %v422 = vadd.f32 %v421, %v202
      %v423 = vsel %vm377, %v203, 0.0
      %v424 = vadd.f32 %v422, %v423
      %425 = vadd.xlane.f32.xlu0 %v424
      %v426 = vpop.xlane.xlu0 %425
      %v427 = vadd.f32 %v204, %v205
      %v428 = vadd.f32 %v427, %v206
      %v429 = vadd.f32 %v428, %v207
      %v430 = vadd.f32 %v429, %v208
      %v431 = vadd.f32 %v430, %v209
      %v432 = vsel %vm377, %v210, 0.0
      %v433 = vadd.f32 %v431, %v432
      %434 = vadd.xlane.f32.xlu0 %v433
      %v435 = vpop.xlane.xlu0 %434
      %v436 = vadd.f32 %v211, %v212
      %v437 = vadd.f32 %v436, %v213
      %v438 = vadd.f32 %v437, %v214
      %v439 = vadd.f32 %v438, %v215
      %v440 = vadd.f32 %v439, %v216
      %v441 = vsel %vm377, %v217, 0.0
      %v442 = vadd.f32 %v440, %v441
      %443 = vadd.xlane.f32.xlu0 %v442
      %v444 = vpop.xlane.xlu0 %443
      %v445 = vadd.f32 %v218, %v219
      %v446 = vadd.f32 %v445, %v220
      %v447 = vadd.f32 %v446, %v221
      %v448 = vadd.f32 %v447, %v222
      %v449 = vadd.f32 %v448, %v223
      %v450 = vsel %vm377, %v224, 0.0
      %v451 = vadd.f32 %v449, %v450
      %452 = vadd.xlane.f32.xlu0 %v451
      %v453 = vpop.xlane.xlu0 %452
      %v454 = vadd.f32 %v225, %v226
      %v455 = vadd.f32 %v454, %v227
      %v456 = vadd.f32 %v455, %v228
      %v457 = vadd.f32 %v456, %v229
      %v458 = vadd.f32 %v457, %v230
      %v459 = vsel %vm377, %v231, 0.0
      %v460 = vadd.f32 %v458, %v459
      %461 = vadd.xlane.f32.xlu0 %v460
      %v462 = vpop.xlane.xlu0 %461
      %v463 = vadd.f32 %v232, %v233
      %v464 = vadd.f32 %v463, %v234
      %v465 = vadd.f32 %v464, %v235
      %v466 = vadd.f32 %v465, %v236
      %v467 = vadd.f32 %v466, %v237
      %v468 = vsel %vm377, %v238, 0.0
      %v469 = vadd.f32 %v467, %v468
      %470 = vadd.xlane.f32.xlu0 %v469
      %v471 = vpop.xlane.xlu0 %470
      %v472 = vadd.f32 %v239, %v240
      %v473 = vadd.f32 %v472, %v241
      %v474 = vadd.f32 %v473, %v242
      %v475 = vadd.f32 %v474, %v243
      %v476 = vadd.f32 %v475, %v244
      %v477 = vsel %vm377, %v245, 0.0
      %v478 = vadd.f32 %v476, %v477
      %479 = vadd.xlane.f32.xlu0 %v478
      %v480 = vpop.xlane.xlu0 %479
      %v481 = vadd.f32 %v246, %v247
      %v482 = vadd.f32 %v481, %v248
      %v483 = vadd.f32 %v482, %v249
      %v484 = vadd.f32 %v483, %v250
      %v485 = vadd.f32 %v484, %v251
      %v486 = vsel %vm377, %v252, 0.0
      %v487 = vadd.f32 %v485, %v486
      %488 = vadd.xlane.f32.xlu0 %v487
      %v489 = vpop.xlane.xlu0 %488
      %v490 = vadd.f32 %v253, %v254
      %v491 = vadd.f32 %v490, %v255
      %v492 = vadd.f32 %v491, %v256
      %v493 = vadd.f32 %v492, %v257
      %v494 = vadd.f32 %v493, %v258
      %v495 = vsel %vm377, %v259, 0.0
      %v496 = vadd.f32 %v494, %v495
      %497 = vadd.xlane.f32.xlu0 %v496
      %v498 = vpop.xlane.xlu0 %497
      %v499 = vadd.f32 %v260, %v261
      %v500 = vadd.f32 %v499, %v262
      %v501 = vadd.f32 %v500, %v263
      %v502 = vadd.f32 %v501, %v264
      %v503 = vadd.f32 %v502, %v265
      %v504 = vsel %vm377, %v266, 0.0
      %v505 = vadd.f32 %v503, %v504
      %506 = vadd.xlane.f32.xlu0 %v505
      %v507 = vpop.xlane.xlu0 %506
      %v508 = vadd.f32 %v267, %v268
      %v509 = vadd.f32 %v508, %v269
      %v510 = vadd.f32 %v509, %v270
      %v511 = vadd.f32 %v510, %v271
      %v512 = vadd.f32 %v511, %v272
      %v513 = vsel %vm377, %v273, 0.0
      %v514 = vadd.f32 %v512, %v513
      %515 = vadd.xlane.f32.xlu0 %v514
      %v516 = vpop.xlane.xlu0 %515
      %v517 = vadd.f32 %v274, %v275
      %v518 = vadd.f32 %v517, %v276
      %v519 = vadd.f32 %v518, %v277
      %v520 = vadd.f32 %v519, %v278
      %v521 = vadd.f32 %v520, %v279
      %v522 = vsel %vm377, %v280, 0.0
      %v523 = vadd.f32 %v521, %v522
      %524 = vadd.xlane.f32.xlu0 %v523
      %v525 = vpop.xlane.xlu0 %524
      %v526 = vadd.f32 %v281, %v282
      %v527 = vadd.f32 %v526, %v283
      %v528 = vadd.f32 %v527, %v284
      %v529 = vadd.f32 %v528, %v285
      %v530 = vadd.f32 %v529, %v286
      %v531 = vsel %vm377, %v287, 0.0
      %v532 = vadd.f32 %v530, %v531
      %533 = vadd.xlane.f32.xlu0 %v532
      %v534 = vpop.xlane.xlu0 %533
      %v535 = vadd.f32 %v288, %v289
      %v536 = vadd.f32 %v535, %v290
      %v537 = vadd.f32 %v536, %v291
      %v538 = vadd.f32 %v537, %v292
      %v539 = vadd.f32 %v538, %v293
      %v540 = vsel %vm377, %v294, 0.0
      %v541 = vadd.f32 %v539, %v540
      %542 = vadd.xlane.f32.xlu0 %v541
      %v543 = vpop.xlane.xlu0 %542
      %v544 = vadd.f32 %v295, %v296
      %v545 = vadd.f32 %v544, %v297
      %v546 = vadd.f32 %v545, %v298
      %v547 = vadd.f32 %v546, %v299
      %v548 = vadd.f32 %v547, %v300
      %v549 = vsel %vm377, %v301, 0.0
      %v550 = vadd.f32 %v548, %v549
      %551 = vadd.xlane.f32.xlu0 %v550
      %v552 = vpop.xlane.xlu0 %551
      %v553 = vadd.f32 %v302, %v303
      %v554 = vadd.f32 %v553, %v304
      %v555 = vadd.f32 %v554, %v305
      %v556 = vadd.f32 %v555, %v306
      %v557 = vadd.f32 %v556, %v307
      %v558 = vsel %vm377, %v308, 0.0
      %v559 = vadd.f32 %v557, %v558
      %560 = vadd.xlane.f32.xlu0 %v559
      %v561 = vpop.xlane.xlu0 %560
      %v562 = vadd.f32 %v309, %v310
      %v563 = vadd.f32 %v562, %v311
      %v564 = vadd.f32 %v563, %v312
      %v565 = vadd.f32 %v564, %v313
      %v566 = vadd.f32 %v565, %v314
      %v567 = vsel %vm377, %v315, 0.0
      %v568 = vadd.f32 %v566, %v567
      %569 = vadd.xlane.f32.xlu0 %v568
      %v570 = vpop.xlane.xlu0 %569
      %v571 = vadd.f32 %v316, %v317
      %v572 = vadd.f32 %v571, %v318
      %v573 = vadd.f32 %v572, %v319
      %v574 = vadd.f32 %v573, %v320
      %v575 = vadd.f32 %v574, %v321
      %v576 = vsel %vm377, %v322, 0.0
      %v577 = vadd.f32 %v575, %v576
      %578 = vadd.xlane.f32.xlu0 %v577
      %v579 = vpop.xlane.xlu0 %578
      %v580 = vadd.f32 %v323, %v324
      %v581 = vadd.f32 %v580, %v325
      %v582 = vadd.f32 %v581, %v326
      %v583 = vadd.f32 %v582, %v327
      %v584 = vadd.f32 %v583, %v328
      %v585 = vsel %vm377, %v329, 0.0
      %v586 = vadd.f32 %v584, %v585
      %587 = vadd.xlane.f32.xlu0 %v586
      %v588 = vpop.xlane.xlu0 %587
      %v589 = vadd.f32 %v330, %v331
      %v590 = vadd.f32 %v589, %v332
      %v591 = vadd.f32 %v590, %v333
      %v592 = vadd.f32 %v591, %v334
      %v593 = vadd.f32 %v592, %v335
      %v594 = vsel %vm377, %v336, 0.0
      %v595 = vadd.f32 %v593, %v594
      %596 = vadd.xlane.f32.xlu0 %v595
      %v597 = vpop.xlane.xlu0 %596
      %v598 = vadd.f32 %v337, %v338
      %v599 = vadd.f32 %v598, %v339
      %v600 = vadd.f32 %v599, %v340
      %v601 = vadd.f32 %v600, %v341
      %v602 = vadd.f32 %v601, %v342
      %v603 = vsel %vm377, %v343, 0.0
      %v604 = vadd.f32 %v602, %v603
      %605 = vadd.xlane.f32.xlu0 %v604
      %v606 = vpop.xlane.xlu0 %605
      %v607 = vadd.f32 %v344, %v345
      %v608 = vadd.f32 %v607, %v346
      %v609 = vadd.f32 %v608, %v347
      %v610 = vadd.f32 %v609, %v348
      %v611 = vadd.f32 %v610, %v349
      %v612 = vsel %vm377, %v350, 0.0
      %v613 = vadd.f32 %v611, %v612
      %614 = vadd.xlane.f32.xlu0 %v613
      %v615 = vpop.xlane.xlu0 %614
      %v616 = vadd.f32 %v351, %v352
      %v617 = vadd.f32 %v616, %v353
      %v618 = vadd.f32 %v617, %v354
      %v619 = vadd.f32 %v618, %v355
      %v620 = vadd.f32 %v619, %v356
      %v621 = vsel %vm377, %v357, 0.0
      %v622 = vadd.f32 %v620, %v621
      %623 = vadd.xlane.f32.xlu0 %v622
      %v624 = vpop.xlane.xlu0 %623
      %v625 = vadd.f32 %v358, %v359
      %v626 = vadd.f32 %v625, %v360
      %v627 = vadd.f32 %v626, %v361
      %v628 = vadd.f32 %v627, %v362
      %v629 = vadd.f32 %v628, %v363
      %v630 = vsel %vm377, %v364, 0.0
      %v631 = vadd.f32 %v629, %v630
      %632 = vadd.xlane.f32.xlu0 %v631
      %v633 = vpop.xlane.xlu0 %632
      %v634 = vadd.f32 %v365, %v366
      %v635 = vadd.f32 %v634, %v367
      %v636 = vadd.f32 %v635, %v368
      %v637 = vadd.f32 %v636, %v369
      %v638 = vadd.f32 %v637, %v370
      %v639 = vsel %vm377, %v371, 0.0
      %v640 = vadd.f32 %v638, %v639
      %641 = vadd.xlane.f32.xlu0 %v640
      %v642 = vpop.xlane.xlu0 %641
      %s643 = scalar_lea.vmem [#allocation2], %s161
      %vm644 = vcmask 7168
      %645 = vst.msk [vmem:[%s643] sm:$0xff] %vm644, %v381
      %646 = vst.msk [vmem:[%s643 + $0x8] sm:$0xff] %vm644, %v390
      %647 = vst.msk [vmem:[%s643 + $0x10] sm:$0xff] %vm644, %v399
      %648 = vst.msk [vmem:[%s643 + $0x18] sm:$0xff] %vm644, %v408
      %649 = vst.msk [vmem:[%s643 + $0x20] sm:$0xff] %vm644, %v417
      %650 = vst.msk [vmem:[%s643 + $0x28] sm:$0xff] %vm644, %v426
      %651 = vst.msk [vmem:[%s643 + $0x30] sm:$0xff] %vm644, %v435
      %652 = vst.msk [vmem:[%s643 + $0x38] sm:$0xff] %vm644, %v444
      %653 = vst.msk [vmem:[%s643 + $0x40] sm:$0xff] %vm644, %v453
      %654 = vst.msk [vmem:[%s643 + $0x48] sm:$0xff] %vm644, %v462
      %655 = vst.msk [vmem:[%s643 + $0x50] sm:$0xff] %vm644, %v471
      %656 = vst.msk [vmem:[%s643 + $0x58] sm:$0xff] %vm644, %v480
      %657 = vst.msk [vmem:[%s643 + $0x60] sm:$0xff] %vm644, %v489
      %658 = vst.msk [vmem:[%s643 + $0x68] sm:$0xff] %vm644, %v498
      %659 = vst.msk [vmem:[%s643 + $0x70] sm:$0xff] %vm644, %v507
      %660 = vst.msk [vmem:[%s643 + $0x78] sm:$0xff] %vm644, %v516
      %661 = vst.msk [vmem:[%s643 + $0x80] sm:$0xff] %vm644, %v525
      %662 = vst.msk [vmem:[%s643 + $0x88] sm:$0xff] %vm644, %v534
      %663 = vst.msk [vmem:[%s643 + $0x90] sm:$0xff] %vm644, %v543
      %664 = vst.msk [vmem:[%s643 + $0x98] sm:$0xff] %vm644, %v552
      %665 = vst.msk [vmem:[%s643 + $0xa0] sm:$0xff] %vm644, %v561
      %666 = vst.msk [vmem:[%s643 + $0xa8] sm:$0xff] %vm644, %v570
      %667 = vst.msk [vmem:[%s643 + $0xb0] sm:$0xff] %vm644, %v579
      %668 = vst.msk [vmem:[%s643 + $0xb8] sm:$0xff] %vm644, %v588
      %669 = vst.msk [vmem:[%s643 + $0xc0] sm:$0xff] %vm644, %v597
      %670 = vst.msk [vmem:[%s643 + $0xc8] sm:$0xff] %vm644, %v606
      %671 = vst.msk [vmem:[%s643 + $0xd0] sm:$0xff] %vm644, %v615
      %672 = vst.msk [vmem:[%s643 + $0xd8] sm:$0xff] %vm644, %v624
      %673 = vst.msk [vmem:[%s643 + $0xe0] sm:$0xff] %vm644, %v633
      %674 = vst.msk [vmem:[%s643 + $0xe8] sm:$0xff] %vm644, %v642
      %p675 = scmp.eq.s32.totalorder %s14, 1
      // Predicated region
      $region33: #{tpu_custom_call.1} parent=31 // pred_check
        %p676 = pneg %p675
      $region34: #{tpu_custom_call.1} parent=31 // pred_check_branch
        %678 = sbr.rel (%p676) target = $region36
      $region35: #{tpu_custom_call.1} parent=31 // pred_region
        %v679 = vld [vmem:[%s1] sm:$0xff]
        %v680 = vld [vmem:[%s1 + $0x8] sm:$0xff]
        %v681 = vld [vmem:[%s1 + $0x10] sm:$0xff]
        %v682 = vld [vmem:[%s1 + $0x18] sm:$0xff]
        %v683 = vld [vmem:[%s1 + $0x20] sm:$0xff]
        %v684 = vld [vmem:[%s1 + $0x28] sm:$0xff]
        %v685 = vld [vmem:[%s1 + $0x30] sm:$0xff]
        %v686 = vld [vmem:[%s1 + $0x38] sm:$0xff]
        %v687 = vld [vmem:[%s1 + $0x40] sm:$0xf]
        %v688 = vld [vmem:[%s1 + $0x48] sm:$0xf]
        %v689 = vld [vmem:[%s1 + $0x50] sm:$0xf]
        %v690 = vld [vmem:[%s1 + $0x58] sm:$0xf]
        %v691 = vld [vmem:[#allocation2] sm:$0xff]
        %v692 = vld [vmem:[#allocation2 + $0x8] sm:$0xff]
        %v693 = vld [vmem:[#allocation2 + $0x10] sm:$0xff]
        %v694 = vld [vmem:[#allocation2 + $0x18] sm:$0xff]
        %v695 = vld [vmem:[#allocation2 + $0x20] sm:$0xff]
        %v696 = vld [vmem:[#allocation2 + $0x28] sm:$0xff]
        %v697 = vld [vmem:[#allocation2 + $0x30] sm:$0xff]
        %v698 = vld [vmem:[#allocation2 + $0x38] sm:$0xff]
        %v699 = vld [vmem:[#allocation2 + $0x40] sm:$0xff]
        %v700 = vld [vmem:[#allocation2 + $0x48] sm:$0xff]
        %v701 = vld [vmem:[#allocation2 + $0x50] sm:$0xff]
        %v702 = vld [vmem:[#allocation2 + $0x58] sm:$0xff]
        %v703 = vld [vmem:[#allocation2 + $0x60] sm:$0xff]
        %v704 = vld [vmem:[#allocation2 + $0x68] sm:$0xff]
        %v705 = vld [vmem:[#allocation2 + $0x70] sm:$0xff]
        %v706 = vld [vmem:[#allocation2 + $0x78] sm:$0xff]
        %v707 = vld [vmem:[#allocation2 + $0x80] sm:$0xff]
        %v708 = vld [vmem:[#allocation2 + $0x88] sm:$0xff]
        %v709 = vld [vmem:[#allocation2 + $0x90] sm:$0xff]
        %v710 = vld [vmem:[#allocation2 + $0x98] sm:$0xff]
        %v711 = vld [vmem:[#allocation2 + $0xa0] sm:$0xff]
        %v712 = vld [vmem:[#allocation2 + $0xa8] sm:$0xff]
        %v713 = vld [vmem:[#allocation2 + $0xb0] sm:$0xff]
        %v714 = vld [vmem:[#allocation2 + $0xb8] sm:$0xff]
        %v715 = vld [vmem:[#allocation2 + $0xc0] sm:$0xff]
        %v716 = vld [vmem:[#allocation2 + $0xc8] sm:$0xff]
        %v717 = vld [vmem:[#allocation2 + $0xd0] sm:$0xff]
        %v718 = vld [vmem:[#allocation2 + $0xd8] sm:$0xff]
        %v719 = vld [vmem:[#allocation2 + $0xe0] sm:$0xff]
        %v720 = vld [vmem:[#allocation2 + $0xe8] sm:$0xff]
        %v721 = vld [vmem:[#allocation2 + $0xf0] sm:$0xff]
        %v722 = vld [vmem:[#allocation2 + $0xf8] sm:$0xff]
        %v723 = vld [vmem:[#allocation2 + $0x100] sm:$0xff]
        %v724 = vld [vmem:[#allocation2 + $0x108] sm:$0xff]
        %v725 = vld [vmem:[#allocation2 + $0x110] sm:$0xff]
        %v726 = vld [vmem:[#allocation2 + $0x118] sm:$0xff]
        %v727 = vld [vmem:[#allocation2 + $0x120] sm:$0xff]
        %v728 = vld [vmem:[#allocation2 + $0x128] sm:$0xff]
        %v729 = vld [vmem:[#allocation2 + $0x130] sm:$0xff]
        %v730 = vld [vmem:[#allocation2 + $0x138] sm:$0xff]
        %v731 = vld [vmem:[#allocation2 + $0x140] sm:$0xff]
        %v732 = vld [vmem:[#allocation2 + $0x148] sm:$0xff]
        %v733 = vld [vmem:[#allocation2 + $0x150] sm:$0xff]
        %v734 = vld [vmem:[#allocation2 + $0x158] sm:$0xff]
        %v735 = vld [vmem:[#allocation2 + $0x160] sm:$0xff]
        %v736 = vld [vmem:[#allocation2 + $0x168] sm:$0xff]
        %v737 = vld [vmem:[#allocation2 + $0x170] sm:$0xff]
        %v738 = vld [vmem:[#allocation2 + $0x178] sm:$0xff]
        %v739 = vld [vmem:[#allocation2 + $0x180] sm:$0xff]
        %v740 = vld [vmem:[#allocation2 + $0x188] sm:$0xff]
        %v741 = vld [vmem:[#allocation2 + $0x190] sm:$0xff]
        %v742 = vld [vmem:[#allocation2 + $0x198] sm:$0xff]
        %v743 = vld [vmem:[#allocation2 + $0x1a0] sm:$0xff]
        %v744 = vld [vmem:[#allocation2 + $0x1a8] sm:$0xff]
        %v745 = vld [vmem:[#allocation2 + $0x1b0] sm:$0xff]
        %v746 = vld [vmem:[#allocation2 + $0x1b8] sm:$0xff]
        %v747 = vld [vmem:[#allocation2 + $0x1c0] sm:$0xff]
        %v748 = vld [vmem:[#allocation2 + $0x1c8] sm:$0xff]
        %v749 = vld [vmem:[#allocation2 + $0x1d0] sm:$0xff]
        %v750 = vld [vmem:[#allocation2 + $0x1d8] sm:$0xff]
        %vm751 = vcmask 785408
        %v753 = vsel %vm751, %v682, 0
        %v756 = vsel %vm751, %v686, 0
        %v759 = vsel %vm751, %v690, 0
        %761 = vmatprep.subr.mxu0 0.0
        %762 = vmatpush1.msra.mxu0 %v706
        %763 = vmatprep.subr.mxu0 0.0
        %764 = vmatpush1.msra.mxu0 %v705
        %765 = vmatprep.subr.mxu0 0.0
        %766 = vmatpush1.msra.mxu0 %v704
        %767 = vmatprep.subr.mxu0 0.0
        %768 = vmatpush1.msra.mxu0 %v703
        %769 = vmatprep.subr.mxu0 0.0
        %770 = vmatpush1.msra.mxu0 %v702
        %771 = vmatprep.subr.mxu0 0.0
        %772 = vmatpush1.msra.mxu0 %v701
        %773 = vmatprep.subr.mxu0 0.0
        %774 = vmatpush1.msra.mxu0 %v700
        %775 = vmatprep.subr.mxu0 0.0
        %776 = vmatpush1.msra.mxu0 %v699
        %777 = vmatprep.subr.mxu0 0.0
        %778 = vmatpush1.msra.mxu0 %v698
        %779 = vmatprep.subr.mxu0 0.0
        %780 = vmatpush1.msra.mxu0 %v697
        %781 = vmatprep.subr.mxu0 0.0
        %782 = vmatpush1.msra.mxu0 %v696
        %783 = vmatprep.subr.mxu0 0.0
        %784 = vmatpush1.msra.mxu0 %v695
        %785 = vmatprep.subr.mxu0 0.0
        %786 = vmatpush1.msra.mxu0 %v694
        %787 = vmatprep.subr.mxu0 0.0
        %788 = vmatpush1.msra.mxu0 %v693
        %789 = vmatprep.subr.mxu0 0.0
        %790 = vmatpush1.msra.mxu0 %v692
        %791 = vmatprep.subr.mxu0 0.0
        %792 = vmatpush1.msra.mxu0 %v691
        %793 = vmatprep.subr.mxu0 0.0
        %794 = vmatpush2.msra.mxu0 %v722
        %795 = vmatprep.subr.mxu0 0.0
        %796 = vmatpush2.msra.mxu0 %v721
        %797 = vmatprep.subr.mxu0 0.0
        %798 = vmatpush2.msra.mxu0 %v720
        %799 = vmatprep.subr.mxu0 0.0
        %800 = vmatpush2.msra.mxu0 %v719
        %801 = vmatprep.subr.mxu0 0.0
        %802 = vmatpush2.msra.mxu0 %v718
        %803 = vmatprep.subr.mxu0 0.0
        %804 = vmatpush2.msra.mxu0 %v717
        %805 = vmatprep.subr.mxu0 0.0
        %806 = vmatpush2.msra.mxu0 %v716
        %807 = vmatprep.subr.mxu0 0.0
        %808 = vmatpush2.msra.mxu0 %v715
        %809 = vmatprep.subr.mxu0 0.0
        %810 = vmatpush2.msra.mxu0 %v714
        %811 = vmatprep.subr.mxu0 0.0
        %812 = vmatpush2.msra.mxu0 %v713
        %813 = vmatprep.subr.mxu0 0.0
        %814 = vmatpush2.msra.mxu0 %v712
        %815 = vmatprep.subr.mxu0 0.0
        %816 = vmatpush2.msra.mxu0 %v711
        %817 = vmatprep.subr.mxu0 0.0
        %818 = vmatpush2.msra.mxu0 %v710
        %819 = vmatprep.subr.mxu0 0.0
        %820 = vmatpush2.msra.mxu0 %v709
        %821 = vmatprep.subr.mxu0 0.0
        %822 = vmatpush2.msra.mxu0 %v708
        %823 = vmatprep.subr.mxu0 0.0
        %824 = vmatpush2.msra.mxu0 %v707
        %825 = vmatprep.mubr.f32.mxu0 %v680
        %826 = vmatmul.mubr.f32.gmra.mxu0 %v679
        %v827 = vpop.f32.mrf.mxu0
        %v828 = vadd.f32 0.0, %v827
        %v829 = vpop.f32.mrf.mxu0
        %830 = vmatprep.mubr.f32.mxu0 %v684
        %831 = vmatmul.mubr.f32.gmra.mxu0 %v683
        %v832 = vpop.f32.mrf.mxu0
        %v833 = vadd.f32 0.0, %v832
        %v834 = vpop.f32.mrf.mxu0
        %835 = vmatprep.mubr.f32.mxu0 %v688
        %836 = vmatmul.mubr.f32.gmra.mxu0 %v687
        %v837 = vpop.f32.mrf.mxu0
        %v838 = vadd.f32 0.0, %v837
        %v839 = vpop.f32.mrf.mxu0
        %840 = vdwg.mxu0
        %841 = vmatprep.subr.mxu0 0.0
        %842 = vmatpush1.msra.mxu0 %v738
        %843 = vmatprep.subr.mxu0 0.0
        %844 = vmatpush1.msra.mxu0 %v737
        %845 = vmatprep.subr.mxu0 0.0
        %846 = vmatpush1.msra.mxu0 %v736
        %847 = vmatprep.subr.mxu0 0.0
        %848 = vmatpush1.msra.mxu0 %v735
        %849 = vmatprep.subr.mxu0 0.0
        %850 = vmatpush1.msra.mxu0 %v734
        %851 = vmatprep.subr.mxu0 0.0
        %852 = vmatpush1.msra.mxu0 %v733
        %853 = vmatprep.subr.mxu0 0.0
        %854 = vmatpush1.msra.mxu0 %v732
        %855 = vmatprep.subr.mxu0 0.0
        %856 = vmatpush1.msra.mxu0 %v731
        %857 = vmatprep.subr.mxu0 0.0
        %858 = vmatpush1.msra.mxu0 %v730
        %859 = vmatprep.subr.mxu0 0.0
        %860 = vmatpush1.msra.mxu0 %v729
        %861 = vmatprep.subr.mxu0 0.0
        %862 = vmatpush1.msra.mxu0 %v728
        %863 = vmatprep.subr.mxu0 0.0
        %864 = vmatpush1.msra.mxu0 %v727
        %865 = vmatprep.subr.mxu0 0.0
        %866 = vmatpush1.msra.mxu0 %v726
        %867 = vmatprep.subr.mxu0 0.0
        %868 = vmatpush1.msra.mxu0 %v725
        %869 = vmatprep.subr.mxu0 0.0
        %870 = vmatpush1.msra.mxu0 %v724
        %871 = vmatprep.subr.mxu0 0.0
        %872 = vmatpush1.msra.mxu0 %v723
        %873 = vmatprep.subr.mxu0 0.0
        %874 = vmatpush2.msra.mxu0 0.0
        %875 = vmatprep.subr.mxu0 0.0
        %876 = vmatpush2.msra.mxu0 0.0
        %877 = vmatprep.subr.mxu0 0.0
        %878 = vmatpush2.msra.mxu0 0.0
        %879 = vmatprep.subr.mxu0 0.0
        %880 = vmatpush2.msra.mxu0 0.0
        %881 = vmatprep.subr.mxu0 0.0
        %882 = vmatpush2.msra.mxu0 %v750
        %883 = vmatprep.subr.mxu0 0.0
        %884 = vmatpush2.msra.mxu0 %v749
        %885 = vmatprep.subr.mxu0 0.0
        %886 = vmatpush2.msra.mxu0 %v748
        %887 = vmatprep.subr.mxu0 0.0
        %888 = vmatpush2.msra.mxu0 %v747
        %889 = vmatprep.subr.mxu0 0.0
        %890 = vmatpush2.msra.mxu0 %v746
        %891 = vmatprep.subr.mxu0 0.0
        %892 = vmatpush2.msra.mxu0 %v745
        %893 = vmatprep.subr.mxu0 0.0
        %894 = vmatpush2.msra.mxu0 %v744
        %895 = vmatprep.subr.mxu0 0.0
        %896 = vmatpush2.msra.mxu0 %v743
        %897 = vmatprep.subr.mxu0 0.0
        %898 = vmatpush2.msra.mxu0 %v742
        %899 = vmatprep.subr.mxu0 0.0
        %900 = vmatpush2.msra.mxu0 %v741
        %901 = vmatprep.subr.mxu0 0.0
        %902 = vmatpush2.msra.mxu0 %v740
        %903 = vmatprep.subr.mxu0 0.0
        %904 = vmatpush2.msra.mxu0 %v739
        %905 = vmatprep.mubr.f32.mxu0 %v753
        %906 = vmatmul.mubr.f32.gmra.mxu0 %v681
        %v907 = vpop.f32.mrf.mxu0
        %v908 = vadd.f32 %v828, %v907
        %v909 = vpop.f32.mrf.mxu0
        %910 = vmatprep.mubr.f32.mxu0 %v756
        %911 = vmatmul.mubr.f32.gmra.mxu0 %v685
        %v912 = vpop.f32.mrf.mxu0
        %v913 = vadd.f32 %v833, %v912
        %v914 = vpop.f32.mrf.mxu0
        %915 = vmatprep.mubr.f32.mxu0 %v759
        %916 = vmatmul.mubr.f32.gmra.mxu0 %v689
        %v917 = vpop.f32.mrf.mxu0
        %v918 = vadd.f32 %v838, %v917
        %v919 = vpop.f32.mrf.mxu0
        %920 = vdwg.mxu0
        %v921 = vmul.f32 %v908, 0.0012755102
        %v922 = vmul.f32 %v913, 0.0012755102
        %v923 = vmul.f32 %v918, 0.0012755102
        %v924 = vld [vmem:[%s2] sm:$0xff]
        %v925 = vld [vmem:[%s2 + $0x8] sm:$0xff]
        %v926 = vld [vmem:[%s2 + $0x10] sm:$0xf]
        %v927 = vadd.f32 %v921, %v924
        %v928 = vadd.f32 %v922, %v925
        %v929 = vadd.f32 %v923, %v926
        %930 = vst.msk [vmem:[%s3] sm:$0xff] %vm644, %v927
        %931 = vst.msk [vmem:[%s3 + $0x8] sm:$0xff] %vm644, %v928
        %vm932 = vcmask 3072
        %933 = vst.msk [vmem:[%s3 + $0x10] sm:$0xf] %vm932, %v929
      $region36: #{tpu_custom_call.1} parent=31 // pred_fallthru
        _
      // Predicated region
      $region37: #{tpu_custom_call.1} parent=31 // pred_check
        %p934 = pneg %p95
      $region38: #{tpu_custom_call.1} parent=31 // pred_check_branch
        %936 = sbr.rel (%p934) target = $region40
      $region39: #{tpu_custom_call.1} parent=31 // pred_region
        _
      $region40: #{tpu_custom_call.1} parent=31 // pred_fallthru
        _
      // Predicated region
      $region41: #{tpu_custom_call.1} parent=31 // pred_check
        %p937 = pneg %p95
      $region42: #{tpu_custom_call.1} parent=31 // pred_check_branch
        %939 = sbr.rel (%p937) target = $region44
      $region43: #{tpu_custom_call.1} parent=31 // pred_region
        _
      $region44: #{tpu_custom_call.1} parent=31 // pred_fallthru
        _
    $region32: #{tpu_custom_call.1} parent=5 // pred_fallthru
      _
    %p940 = scmp.le.s32.totalorder 2, %s9
    // Predicated region
    $region45: #{tpu_custom_call.1} parent=5 // pred_check
      %p941 = pneg %p940
    $region46: #{tpu_custom_call.1} parent=5 // pred_check_branch
      %943 = sbr.rel (%p941) target = $region48
    $region47: #{tpu_custom_call.1} parent=5 // pred_region
      %s944 = ssub.s32 %s9, 2
    $region48: #{tpu_custom_call.1} parent=5 // pred_fallthru
      _
  $region6: #{tpu_custom_call.1} parent=0 // loop_footer
    %s13 = sadd.s32 1, %s9
  $region7: #{tpu_custom_call.1} parent=0 // loop_footer_branch
    %8 = sbr.rel target = $region3
  $region8: #{tpu_custom_call.1} parent=0 // loop_exit
    _

</llo_original>
